<compile_context>
chip_gen: v5e
topology: v5e:2x2
jax: 0.10.0
libtpu: 0.0.40
codegen_flags: <defaults>
</compile_context>

<pallas_src>
import functools

import jax
import jax.numpy as jnp
from jax.experimental import pallas as pl
from jax.experimental.pallas import tpu as pltpu

_LANE = 128


def _row_align(itemsize: int) -> int:
    # Minimum sublane packing per dtype width: f32 -> 8, bf16 -> 16, 8-bit -> 32.
    return {4: 8, 2: 16, 1: 32}.get(itemsize, 8)


def _chip_has_bf16_vector() -> bool:
    """True on generations whose VPU/EUP handle bf16 natively (v6e / v7x)."""
    try:
        kind = jax.devices()[0].device_kind.lower()
    except Exception:
        return False
    return ("v6" in kind) or ("v7" in kind)


def _swish_kernel(x_ref, o_ref, *, compute_dtype):
    x = x_ref[...].astype(compute_dtype)
    # Single EUP op per element: sigmoid(x) = 0.5 * tanh(0.5 * x) + 0.5.
    # Avoids exp + exact-reciprocal (Newton VPU iterations) of jax.nn.sigmoid.
    sig = 0.5 * jnp.tanh(0.5 * x) + 0.5
    o_ref[...] = (x * sig).astype(o_ref.dtype)


def _choose_width(n: int):
    """Widest lane-dense slab width W (multiple of 128) that divides n."""
    for w in (8192, 4096, 2048, 1024, 512, 256, 128):
        if n % w == 0:
            return w
    return None


def _choose_tile_rows(rows: int, ralign: int, w: int, itemsize: int,
                      target_tile_bytes: int) -> int:
    """Tile rows: ~target_tile_bytes, multiple of `ralign` (or == rows), shrunk
    so the grid has >= 2 steps (megacore) and >= 8 while tiles stay >= 1 MiB."""
    tr_budget = max(ralign, (target_tile_bytes // (w * itemsize)) // ralign * ralign)
    tr = min(rows, tr_budget)
    if tr < rows:
        tr = max(ralign, (tr // ralign) * ralign)

    def shrink(t):
        return max(ralign, ((t // 2) // ralign) * ralign)

    # Hard: both v7x TensorCores must get at least one block when possible.
    while tr > ralign and pl.cdiv(rows, tr) < 2:
        nt = shrink(tr)
        if nt == tr:
            break
        tr = nt
    # Soft: prefer >= 8 blocks for load balance, but keep tiles >= 1 MiB.
    while tr > ralign and pl.cdiv(rows, tr) < 8 and tr * w * itemsize > (1 << 20):
        nt = shrink(tr)
        if nt == tr:
            break
        tr = nt
    return tr


def swish(x: jax.Array, *,
          target_tile_bytes: int = 4 * 1024 * 1024,
          donate_input: bool = False) -> jax.Array:
    """Elementwise swish: x * sigmoid(x).

    Matches the PyTorch module's forward; `inplace=True` buffer mutation has no
    JAX analogue (arrays are immutable) — pass donate_input=True and donate the
    argument for the equivalent buffer-reuse behaviour.
    """
    orig_shape = x.shape
    dtype = x.dtype
    itemsize = jnp.dtype(dtype).itemsize
    ralign = _row_align(itemsize)

    # Compute dtype: native bf16 on v6e/v7x (halves vreg/VALU/EUP width work);
    # exact f32 internals otherwise (required on v5e: no bf16 VPU/EUP).
    if itemsize >= 4 or not _chip_has_bf16_vector():
        compute_dtype = jnp.float32
    else:
        compute_dtype = dtype

    flat = x.reshape(-1)
    n = flat.shape[0]

    w = _choose_width(n)
    padded = False
    if w is None:
        # Ragged element count (rare for NN activation shapes). swish(0) == 0,
        # so zero padding is numerically safe.
        # TODO(synk): replace pad+slice (extra HBM passes) with a masked tail block.
        w = _LANE
        n_pad = pl.cdiv(n, w) * w
        flat = jnp.pad(flat, (0, n_pad - n))
        padded = True

    rows = flat.shape[0] // w
    x2d = flat.reshape(rows, w)

    tr = _choose_tile_rows(rows, ralign, w, itemsize, target_tile_bytes)
    grid = pl.cdiv(rows, tr)

    tile_bytes = tr * w * itemsize
    # 2x double-buffered (in + out) tiles + Mosaic scratch headroom, derived
    # from the actual tiles; capped at 64 MiB so v7x VMEM is never oversubscribed.
    vmem_limit_bytes = min(64 * 1024 * 1024, 4 * tile_bytes + 8 * 1024 * 1024)

    kernel = functools.partial(_swish_kernel, compute_dtype=compute_dtype)

    out2d = pl.pallas_call(
        kernel,
        out_shape=jax.ShapeDtypeStruct((rows, w), dtype),
        grid_spec=pltpu.PrefetchScalarGridSpec(
            num_scalar_prefetch=0,
            grid=(grid,),
            in_specs=[pl.BlockSpec((tr, w), lambda i: (i, 0))],
            out_specs=pl.BlockSpec((tr, w), lambda i: (i, 0)),
        ),
        compiler_params=pltpu.CompilerParams(
            dimension_semantics=("parallel",),   # megacore-shardable on v7x
            vmem_limit_bytes=vmem_limit_bytes,
        ),
        # Aliasing mirrors torch inplace=True, but forces a defensive copy if
        # the caller did not donate the input, so it stays opt-in.
        input_output_aliases={0: 0} if donate_input else {},
    )(x2d)

    if padded:
        return out2d.reshape(-1)[:n].reshape(orig_shape)
    return out2d.reshape(orig_shape)


if __name__ == "__main__":
    key = jax.random.PRNGKey(0)

    # Small shape consistent with the module's typical (N, C, H, W) usage.
    x = jax.random.normal(key, (2, 4, 16, 16), dtype=jnp.float32)
    out = jax.block_until_ready(swish(x))
    ref = x * jax.nn.sigmoid(x)
    assert out.shape == x.shape and out.dtype == x.dtype
    assert jnp.allclose(out, ref, atol=1e-5, rtol=1e-5)

    # Larger wide-slab path (exercises multi-step grid / megacore split).
    x_big = jax.random.normal(key, (8, 64, 32, 32), dtype=jnp.float32)
    out_big = jax.block_until_ready(swish(x_big))
    assert jnp.allclose(out_big, x_big * jax.nn.sigmoid(x_big), atol=1e-5, rtol=1e-5)

    # bf16 path (native bf16 compute on v6e/v7x, f32-internal elsewhere).
    x_bf16 = x.astype(jnp.bfloat16)
    out_bf16 = jax.block_until_ready(swish(x_bf16))
    ref_bf16 = (x_bf16.astype(jnp.float32) *
                jax.nn.sigmoid(x_bf16.astype(jnp.float32))).astype(jnp.bfloat16)
    assert out_bf16.dtype == jnp.bfloat16
    assert jnp.allclose(out_bf16.astype(jnp.float32), ref_bf16.astype(jnp.float32),
                        atol=2e-2, rtol=2e-2)

    # Ragged element count (pad fallback path).
    x_odd = jax.random.normal(key, (3, 5, 7), dtype=jnp.float32)
    out_odd = jax.block_until_ready(swish(x_odd))
    assert out_odd.shape == x_odd.shape
    assert jnp.allclose(out_odd, x_odd * jax.nn.sigmoid(x_odd), atol=1e-5, rtol=1e-5)

    print("KERNEL_OK")
</pallas_src>

<mosaic_0001>
module attributes {stable_mosaic.version = 11 : i64} {
  func.func @_swish_kernel(%arg0: i32, %arg1: memref<1x2048xf32, #tpu.memory_space<vmem>>, %arg2: memref<1x2048xf32, #tpu.memory_space<vmem>>) attributes {dimension_semantics = [#tpu.dimension_semantics<parallel>], iteration_bounds = array<i64: 1>, scalar_prefetch = 0 : i64, scratch_operands = 0 : i64, tpu.core_type = #tpu.core_type<tc>, window_params = [{transform_indices = @transform_0, window_bounds = array<i64: 1, 2048>}, {transform_indices = @transform_1, window_bounds = array<i64: 1, 2048>}]} {
    %c0 = arith.constant 0 : index
    %c0_0 = arith.constant 0 : index
    %0 = vector.load %arg1[%c0, %c0_0] : memref<1x2048xf32, #tpu.memory_space<vmem>>, vector<1x2048xf32>
    %cst = arith.constant 5.000000e-01 : f32
    %1 = vector.broadcast %cst : f32 to vector<1x2048xf32>
    %2 = arith.mulf %1, %0 : vector<1x2048xf32>
    %3 = math.tanh %2 : vector<1x2048xf32>
    %cst_1 = arith.constant 5.000000e-01 : f32
    %4 = vector.broadcast %cst_1 : f32 to vector<1x2048xf32>
    %5 = arith.mulf %4, %3 : vector<1x2048xf32>
    %cst_2 = arith.constant 5.000000e-01 : f32
    %6 = vector.broadcast %cst_2 : f32 to vector<1x2048xf32>
    %7 = arith.addf %5, %6 : vector<1x2048xf32>
    %8 = arith.mulf %0, %7 : vector<1x2048xf32>
    %c0_3 = arith.constant 0 : index
    %c0_4 = arith.constant 0 : index
    %9 = vector.load %arg2[%c0_3, %c0_4] : memref<1x2048xf32, #tpu.memory_space<vmem>>, vector<1x2048xf32>
    tpu.vector_store %arg2[%c0_3, %c0_4], %8 {strides = array<i32>} : memref<1x2048xf32, #tpu.memory_space<vmem>>, vector<1x2048xf32>,
    return
  }
  func.func @transform_0(%arg0: i32) -> (i32, i32) {
    %c0_i32 = arith.constant 0 : i32
    %c0_i32_0 = arith.constant 0 : i32
    return %arg0, %c0_i32 : i32, i32
  }
  func.func @transform_1(%arg0: i32) -> (i32, i32) {
    %c0_i32 = arith.constant 0 : i32
    %c0_i32_0 = arith.constant 0 : i32
    return %arg0, %c0_i32 : i32, i32
  }
}

</mosaic_0001>

<llo_original>
// kernel: tpu_custom_call.1
$region0: #{tpu_custom_call.1}
  #allocation0 [shape = 'u32[]', space=smem, size = 0x4, offset = 0x4, fixed_abs, tag = 'smem constant byte address 0x4 - core index']
  #allocation1 [shape = 'u32[72,128]{1,0:T(1,128)}', space=vmem, size = 0x9000, scoped, tag = 'internal scratch']
  %s0 = inlined_call_operand.hbm [shape: f32[1,2048], index: 0, kind: input, shape index: {}]
  %s1 = inlined_call_operand.hbm [shape: f32[1,2048], index: 1, kind: output, shape index: {}]
  %s2 = sld [smem:[#allocation0]]
  $region18: #{tpu_custom_call.1} parent=0
    _
  %s4 = ssub.s32 1, %s2
  %s5 = scalar_select 0, %s4, %s2
  $region1: #{tpu_custom_call.1} parent=0
    #allocation2 [shape = 'u8[8192]{0}', space=vmem, size = 0x2000, scoped, tag = 'input window, operand 0, single buffered']
    #allocation3 [shape = 's32[1]{0}', space=sflag, size = 0x4, scoped, tag = 'scoped memory for tpu_custom_call.1']
    #allocation4 [shape = 's32[1]{0}', space=sflag, size = 0x4, scoped, tag = 'scoped memory for tpu_custom_call.1']
    #allocation5 [shape = 'u8[8192]{0}', space=vmem, size = 0x2000, scoped, tag = 'output window, operand 0, single buffered']
    %6 = vsyncpa [#allocation3], 0
    %7 = vsyncpa [#allocation4], 0
    // Predicated region
    $region2: #{tpu_custom_call.1} parent=1 // pred_check
      _
    $region3: #{tpu_custom_call.1} parent=1 // pred_check_branch
      %9 = sbr.rel (0) target = $region5
    $region4: #{tpu_custom_call.1} parent=1 // pred_region
      %11 = vsyncadd [#allocation3], 0
      %s13 = sshll.u32 %s0, 4
      %s14 = int_to_ptr.hbm [resolvable:$true] %s13
      %s15 = sshll.u32 [#allocation2], 4
      %s16 = int_to_ptr.vmem [resolvable:$true] %s15
      %18 = dma.hbm_to_vmem [thread:$0]  %s14, 256, %s16, [#allocation3]
    $region5: #{tpu_custom_call.1} parent=1 // pred_fallthru
      _
    // Predicated region
    $region6: #{tpu_custom_call.1} parent=1 // pred_check
      _
    $region7: #{tpu_custom_call.1} parent=1 // pred_check_branch
      %20 = sbr.rel (0) target = $region9
    $region8: #{tpu_custom_call.1} parent=1 // pred_region
      %22 = dma.done [#allocation3], 256
    $region9: #{tpu_custom_call.1} parent=1 // pred_fallthru
      _
    %v23 = vld [vmem:[#allocation2] sm:$0xff]
    %v24 = vld [vmem:[#allocation2 + $0x8] sm:$0xff]
    %v25 = vmul.f32 %v23, 0.5
    %v26 = vmul.f32 %v24, 0.5
    %v27 = vtanh.pop %v25
    %v28 = vtanh.pop %v26
    %v29 = vmul.f32 %v27, 0.5
    %v30 = vmul.f32 %v28, 0.5
    %v31 = vadd.f32 %v29, 0.5
    %v32 = vadd.f32 %v30, 0.5
    %v33 = vmul.f32 %v23, %v31
    %v34 = vmul.f32 %v24, %v32
    %35 = vst [vmem:[#allocation5] sm:$0xff] %v33
    %36 = vst [vmem:[#allocation5 + $0x8] sm:$0xff] %v34
    // Predicated region
    $region10: #{tpu_custom_call.1} parent=1 // pred_check
      _
    $region11: #{tpu_custom_call.1} parent=1 // pred_check_branch
      %38 = sbr.rel (0) target = $region13
    $region12: #{tpu_custom_call.1} parent=1 // pred_region
      %40 = vsyncadd [#allocation4], 0
      %s42 = sshll.u32 [#allocation5], 4
      %s43 = int_to_ptr.vmem [resolvable:$true] %s42
      %s44 = sshll.u32 %s1, 4
      %s45 = int_to_ptr.hbm [resolvable:$true] %s44
      %47 = dma.vmem_to_hbm [thread:$0]  %s43, 256, %s45, [#allocation4]
    $region13: #{tpu_custom_call.1} parent=1 // pred_fallthru
      _
    // Predicated region
    $region14: #{tpu_custom_call.1} parent=1 // pred_check
      _
    $region15: #{tpu_custom_call.1} parent=1 // pred_check_branch
      %49 = sbr.rel (0) target = $region17
    $region16: #{tpu_custom_call.1} parent=1 // pred_region
      %51 = dma.done [#allocation4], 256
    $region17: #{tpu_custom_call.1} parent=1 // pred_fallthru
      _
    %52 = vsyncpa [#allocation3], 1
    %53 = vsyncpa [#allocation4], 1

</llo_original>
